<compile_context>
chip_gen: v7x
topology: tpu7x:2x2x1
jax: 0.10.0
libtpu: 0.0.40
codegen_flags: <defaults>
</compile_context>

<pallas_src>
import functools

import jax
import jax.numpy as jnp
from jax.experimental import pallas as pl
from jax.experimental.pallas import tpu as pltpu


# ---------------------------------------------------------------------------
# Static geometry helpers (shared by packing and the kernel wrapper)
# ---------------------------------------------------------------------------
def _round_up(x, m):
    return (x + m - 1) // m * m


def _slab_geometry(state_dim, action_dim, hidden_width):
    """Fused layer dims + padded slab geometry.

    Returns:
      fused_dims : [(d_in, d_out)] of every fused (Q1||Q2) layer (actual dims)
      state_pad  : state K rounded up to a sublane multiple (8)
      action_pad : action K rounded up to a sublane multiple (8)
      bias_row   : sublane row index where each slot stores its bias
      p_in, p_out: padded slab sublane / lane extents
    """
    dims = [state_dim + action_dim] + [2 * h for h in hidden_width] + [2]
    fused_dims = list(zip(dims[:-1], dims[1:]))
    state_pad = _round_up(state_dim, 8)
    action_pad = _round_up(action_dim, 8)
    hidden_in_pads = [_round_up(d_in, 8) for d_in, _ in fused_dims[1:]]
    bias_row = max([state_pad, action_pad] + hidden_in_pads)
    p_in = _round_up(bias_row + 1, 8)
    p_out = max(d_out for _, d_out in fused_dims)
    return fused_dims, state_pad, action_pad, bias_row, p_in, p_out


# ---------------------------------------------------------------------------
# Kernel
# ---------------------------------------------------------------------------
def _make_critic_kernel(state_pad, action_pad, fused_dims, bias_row, compute_dtype):
    """Build the fused twin-Q kernel closure (all slicing is static)."""
    n_layers = len(fused_dims)
    cast_back = jnp.dtype(compute_dtype) != jnp.dtype(jnp.float32)

    def kernel(s_ref, a_ref, slab_ref, out_ref):
        # ---- Layer 0:  s @ W_s + a @ W_a + b0   (no host-side [s, a] concat) ----
        d_out0 = fused_dims[0][1]
        x = (
            jnp.dot(s_ref[...], slab_ref[0, :state_pad, :d_out0],
                    preferred_element_type=jnp.float32)
            + jnp.dot(a_ref[...], slab_ref[1, :action_pad, :d_out0],
                      preferred_element_type=jnp.float32)
            + slab_ref[0, bias_row:bias_row + 1, :d_out0]
        )
        if n_layers > 1:
            x = jnp.maximum(x, 0.0)

        # ---- Remaining fused layers: block-diag hidden + fused [2H, 2] output ----
        for i in range(1, n_layers):
            d_in, d_out = fused_dims[i]
            if cast_back:
                # Keep the bf16 MXU fast path on v6e/v7x (accumulation stays f32).
                x = x.astype(compute_dtype)
            x = (jnp.dot(x, slab_ref[i + 1, :d_in, :d_out],
                         preferred_element_type=jnp.float32)
                 + slab_ref[i + 1, bias_row:bias_row + 1, :d_out])
            if i < n_layers - 1:
                x = jnp.maximum(x, 0.0)

        # [B, 2]: column 0 = Q1, column 1 = Q2.
        out_ref[...] = x.astype(out_ref.dtype)

    return kernel


# ---------------------------------------------------------------------------
# Wrappers
# ---------------------------------------------------------------------------
def critic_forward_fused(s, a, slab, *, state_dim, action_dim, hidden_width,
                         compute_dtype=jnp.float32):
    """Pallas-backed forward pass; returns the fused (B, 2) Q array (col0=Q1, col1=Q2).

    s: [B, state_dim], a: [B, action_dim]
    slab: [n_layers + 1, P_in, P_out] packed weights+biases (see pack_critic_params;
          pack with the same dtype as compute_dtype — the slab is NOT re-cast here).
    """
    B = s.shape[0]
    fused_dims, state_pad, action_pad, bias_row, p_in, p_out = _slab_geometry(
        state_dim, action_dim, hidden_width)
    assert slab.shape == (len(fused_dims) + 1, p_in, p_out), "slab geometry mismatch"

    s = s.astype(compute_dtype)
    a = a.astype(compute_dtype)
    # Zero-pad the activations to the sublane-aligned K used by the weight slices
    # (slab rows beyond the real dims are also zero, so the result is exact).
    if state_pad != state_dim:
        s = jnp.pad(s, ((0, 0), (0, state_pad - state_dim)))
    if action_pad != action_dim:
        a = jnp.pad(a, ((0, 0), (0, action_pad - action_dim)))

    kernel = _make_critic_kernel(state_pad, action_pad, fused_dims, bias_row,
                                 compute_dtype)

    # Advisory cost hint for XLA's scheduler around the custom call.
    d_out0 = fused_dims[0][1]
    flops = 2 * B * (state_pad + action_pad) * d_out0
    for d_in, d_out in fused_dims[1:]:
        flops += 2 * B * d_in * d_out
    bytes_accessed = (s.size * s.dtype.itemsize + a.size * a.dtype.itemsize
                      + slab.size * slab.dtype.itemsize + B * 2 * 4)

    out = pl.pallas_call(
        kernel,
        out_shape=jax.ShapeDtypeStruct((B, 2), jnp.float32),
        # Whole working set is VMEM-resident -> full-array operands, no grid.
        in_specs=[pl.BlockSpec(memory_space=pltpu.MemorySpace.VMEM)] * 3,
        out_specs=pl.BlockSpec(memory_space=pltpu.MemorySpace.VMEM),
        cost_estimate=pl.CostEstimate(flops=int(flops), transcendentals=0,
                                      bytes_accessed=int(bytes_accessed)),
    )(s, a, slab)
    return out


def critic_forward(s, a, slab, *, state_dim, action_dim, hidden_width,
                   compute_dtype=jnp.float32):
    """Module-semantics entry point: returns (q1, q2), each [B, 1] float32.

    Prefer critic_forward_fused (returns the (B, 2) array) in hot loops to avoid
    the two wrapper-side slice ops.
    """
    out = critic_forward_fused(s, a, slab, state_dim=state_dim, action_dim=action_dim,
                               hidden_width=hidden_width, compute_dtype=compute_dtype)
    return out[:, 0:1], out[:, 1:2]


# ---------------------------------------------------------------------------
# Parameter packing (host-side, done once per parameter update)
# ---------------------------------------------------------------------------
def pack_critic_params(state_dim, action_dim, q1_params, q2_params,
                       dtype=jnp.float32):
    """Fuse twin-Q parameters into ONE contiguous slab [n_layers + 1, P_in, P_out].

    q*_params: list of (W, b) per layer in PyTorch nn.Linear layout
               (W: [out, in], b: [out]).

    Slot layout (zero-padded; bias of each layer stored at sublane row `bias_row`):
      slot 0     -> W_s  (layer-0 fused weight rows for the state part)  + layer-0 bias
      slot 1     -> W_a  (layer-0 fused weight rows for the action part)
      slot i + 1 -> block-diagonal fused weight of layer i (i >= 1)       + layer-i bias
    """
    hidden_width = tuple(int(w.shape[0]) for (w, _) in q1_params[:-1])
    fused_dims, state_pad, action_pad, bias_row, p_in, p_out = _slab_geometry(
        state_dim, action_dim, hidden_width)

    fused_w, fused_b = [], []
    for i, ((w1, b1), (w2, b2)) in enumerate(zip(q1_params, q2_params)):
        w1t, w2t = w1.T, w2.T  # [in, out]
        if i == 0:
            w = jnp.concatenate([w1t, w2t], axis=1)  # [in, 2*out]
        else:
            z12 = jnp.zeros((w1t.shape[0], w2t.shape[1]), w1t.dtype)
            z21 = jnp.zeros((w2t.shape[0], w1t.shape[1]), w1t.dtype)
            w = jnp.concatenate(
                [jnp.concatenate([w1t, z12], axis=1),
                 jnp.concatenate([z21, w2t], axis=1)], axis=0)  # block-diagonal
        fused_w.append(w)
        fused_b.append(jnp.concatenate([b1, b2]))

    n_slots = len(fused_w) + 1
    slab = jnp.zeros((n_slots, p_in, p_out), jnp.float32)

    # Layer 0, split by input so the kernel consumes s and a separately.
    w_s = fused_w[0][:state_dim]
    w_a = fused_w[0][state_dim:]
    slab = slab.at[0, :w_s.shape[0], :w_s.shape[1]].set(w_s)
    slab = slab.at[1, :w_a.shape[0], :w_a.shape[1]].set(w_a)
    slab = slab.at[0, bias_row, :fused_b[0].shape[0]].set(fused_b[0])

    # Deeper fused layers.
    for i in range(1, len(fused_w)):
        w = fused_w[i]
        slab = slab.at[i + 1, :w.shape[0], :w.shape[1]].set(w)
        slab = slab.at[i + 1, bias_row, :fused_b[i].shape[0]].set(fused_b[i])

    # Dtype conversion happens here (once), not per forward call.
    return slab.astype(dtype)


def init_critic_params(key, state_dim, action_dim, hidden_width):
    """Per-head params in PyTorch nn.Linear layout: (W [out, in], b [out]),
    init U(-1/sqrt(fan_in), 1/sqrt(fan_in)) like nn.Linear."""
    input_dim = state_dim + action_dim
    dims = [input_dim] + list(hidden_width) + [1]

    def init_head(k):
        params = []
        for d_in, d_out in zip(dims[:-1], dims[1:]):
            k, kw, kb = jax.random.split(k, 3)
            bound = 1.0 / float(d_in) ** 0.5
            w = jax.random.uniform(kw, (d_out, d_in), jnp.float32, -bound, bound)
            b = jax.random.uniform(kb, (d_out,), jnp.float32, -bound, bound)
            params.append((w, b))
        return params

    k1, k2 = jax.random.split(key)
    return init_head(k1), init_head(k2)


# ---------------------------------------------------------------------------
# Pure-JAX reference (matches the PyTorch module semantics exactly)
# ---------------------------------------------------------------------------
def critic_forward_ref(s, a, q1_params, q2_params):
    sa = jnp.concatenate([s, a], axis=1).astype(jnp.float32)

    def run_head(params):
        x = sa
        for i, (w, b) in enumerate(params):
            x = x @ w.T + b
            if i < len(params) - 1:
                x = jnp.maximum(x, 0.0)
        return x

    return run_head(q1_params), run_head(q2_params)


if __name__ == "__main__":
    # Small, module-consistent shapes.
    batch = 8
    state_dim = 12
    action_dim = 4
    hidden_width = (32, 32)

    key = jax.random.PRNGKey(0)
    k_s, k_a, k_p = jax.random.split(key, 3)

    s = jax.random.normal(k_s, (batch, state_dim), jnp.float32)
    a = jax.random.normal(k_a, (batch, action_dim), jnp.float32)

    q1_params, q2_params = init_critic_params(k_p, state_dim, action_dim, hidden_width)
    slab = pack_critic_params(state_dim, action_dim, q1_params, q2_params,
                              dtype=jnp.float32)

    fwd = jax.jit(functools.partial(
        critic_forward,
        state_dim=state_dim, action_dim=action_dim, hidden_width=hidden_width))
    q1, q2 = fwd(s, a, slab)
    q1 = jax.block_until_ready(q1)
    q2 = jax.block_until_ready(q2)

    # Correctness check against the pure-JAX reference.
    q1_ref, q2_ref = critic_forward_ref(s, a, q1_params, q2_params)
    assert q1.shape == (batch, 1) and q2.shape == (batch, 1)
    assert jnp.allclose(q1, q1_ref, atol=1e-5, rtol=1e-5)
    assert jnp.allclose(q2, q2_ref, atol=1e-5, rtol=1e-5)

    print("KERNEL_OK")
</pallas_src>

<mosaic_0001>
module attributes {stable_mosaic.version = 11 : i64} {
  func.func @kernel(%arg0: memref<8x16xf32, #tpu.memory_space<vmem>>, %arg1: memref<8x8xf32, #tpu.memory_space<vmem>>, %arg2: memref<4x72x64xf32, #tpu.memory_space<vmem>>, %arg3: memref<8x2xf32, #tpu.memory_space<vmem>>) attributes {dimension_semantics = [], scalar_prefetch = 0 : i64, scratch_operands = 0 : i64, tpu.core_type = #tpu.core_type<tc>} {
    %c0 = arith.constant 0 : index
    %c0_0 = arith.constant 0 : index
    %0 = vector.load %arg0[%c0, %c0_0] : memref<8x16xf32, #tpu.memory_space<vmem>>, vector<8x16xf32>
    %c0_1 = arith.constant 0 : index
    %c0_2 = arith.constant 0 : index
    %c0_3 = arith.constant 0 : index
    %1 = vector.load %arg2[%c0_1, %c0_2, %c0_3] : memref<4x72x64xf32, #tpu.memory_space<vmem>>, vector<1x16x64xf32>
    %2 = vector.shape_cast %1 : vector<1x16x64xf32> to vector<16x64xf32>
    %cst = arith.constant dense<0.000000e+00> : vector<8x64xf32>
    %3 = tpu.matmul %0, %2, %cst {dimension_numbers = #tpu.dot_dimension_numbers<[1], [0], [0], [1], [0, 0, 1, 1], [], []>} : vector<8x16xf32>, vector<16x64xf32>, vector<8x64xf32> -> vector<8x64xf32>
    %c0_4 = arith.constant 0 : index
    %c0_5 = arith.constant 0 : index
    %4 = vector.load %arg1[%c0_4, %c0_5] : memref<8x8xf32, #tpu.memory_space<vmem>>, vector<8x8xf32>
    %c1 = arith.constant 1 : index
    %c0_6 = arith.constant 0 : index
    %c0_7 = arith.constant 0 : index
    %5 = vector.load %arg2[%c1, %c0_6, %c0_7] : memref<4x72x64xf32, #tpu.memory_space<vmem>>, vector<1x8x64xf32>
    %6 = vector.shape_cast %5 : vector<1x8x64xf32> to vector<8x64xf32>
    %cst_8 = arith.constant dense<0.000000e+00> : vector<8x64xf32>
    %7 = tpu.matmul %4, %6, %cst_8 {dimension_numbers = #tpu.dot_dimension_numbers<[1], [0], [0], [1], [0, 0, 1, 1], [], []>} : vector<8x8xf32>, vector<8x64xf32>, vector<8x64xf32> -> vector<8x64xf32>
    %8 = arith.addf %3, %7 : vector<8x64xf32>
    %c0_9 = arith.constant 0 : index
    %c64 = arith.constant 64 : index
    %c0_10 = arith.constant 0 : index
    %9 = vector.load %arg2[%c0_9, %c64, %c0_10] : memref<4x72x64xf32, #tpu.memory_space<vmem>>, vector<1x1x64xf32>
    %10 = vector.shape_cast %9 : vector<1x1x64xf32> to vector<1x64xf32>
    %11 = vector.broadcast %10 : vector<1x64xf32> to vector<8x64xf32>
    %12 = arith.addf %8, %11 : vector<8x64xf32>
    %cst_11 = arith.constant 0.000000e+00 : f32
    %13 = vector.broadcast %cst_11 : f32 to vector<8x64xf32>
    %14 = arith.maximumf %12, %13 : vector<8x64xf32>
    %c2 = arith.constant 2 : index
    %c0_12 = arith.constant 0 : index
    %c0_13 = arith.constant 0 : index
    %15 = vector.load %arg2[%c2, %c0_12, %c0_13] : memref<4x72x64xf32, #tpu.memory_space<vmem>>, vector<1x64x64xf32>
    %16 = vector.shape_cast %15 : vector<1x64x64xf32> to vector<64x64xf32>
    %cst_14 = arith.constant dense<0.000000e+00> : vector<8x64xf32>
    %17 = tpu.matmul %14, %16, %cst_14 {dimension_numbers = #tpu.dot_dimension_numbers<[1], [0], [0], [1], [0, 0, 1, 1], [], []>} : vector<8x64xf32>, vector<64x64xf32>, vector<8x64xf32> -> vector<8x64xf32>
    %c2_15 = arith.constant 2 : index
    %c64_16 = arith.constant 64 : index
    %c0_17 = arith.constant 0 : index
    %18 = vector.load %arg2[%c2_15, %c64_16, %c0_17] : memref<4x72x64xf32, #tpu.memory_space<vmem>>, vector<1x1x64xf32>
    %19 = vector.shape_cast %18 : vector<1x1x64xf32> to vector<1x64xf32>
    %20 = vector.broadcast %19 : vector<1x64xf32> to vector<8x64xf32>
    %21 = arith.addf %17, %20 : vector<8x64xf32>
    %cst_18 = arith.constant 0.000000e+00 : f32
    %22 = vector.broadcast %cst_18 : f32 to vector<8x64xf32>
    %23 = arith.maximumf %21, %22 : vector<8x64xf32>
    %c3 = arith.constant 3 : index
    %c0_19 = arith.constant 0 : index
    %c0_20 = arith.constant 0 : index
    %24 = vector.load %arg2[%c3, %c0_19, %c0_20] : memref<4x72x64xf32, #tpu.memory_space<vmem>>, vector<1x64x2xf32>
    %25 = vector.shape_cast %24 : vector<1x64x2xf32> to vector<64x2xf32>
    %cst_21 = arith.constant dense<0.000000e+00> : vector<8x2xf32>
    %26 = tpu.matmul %23, %25, %cst_21 {dimension_numbers = #tpu.dot_dimension_numbers<[1], [0], [0], [1], [0, 0, 1, 1], [], []>} : vector<8x64xf32>, vector<64x2xf32>, vector<8x2xf32> -> vector<8x2xf32>
    %c3_22 = arith.constant 3 : index
    %c64_23 = arith.constant 64 : index
    %c0_24 = arith.constant 0 : index
    %27 = vector.load %arg2[%c3_22, %c64_23, %c0_24] : memref<4x72x64xf32, #tpu.memory_space<vmem>>, vector<1x1x2xf32>
    %28 = vector.shape_cast %27 : vector<1x1x2xf32> to vector<1x2xf32>
    %29 = vector.broadcast %28 : vector<1x2xf32> to vector<8x2xf32>
    %30 = arith.addf %26, %29 : vector<8x2xf32>
    %c0_25 = arith.constant 0 : index
    %c0_26 = arith.constant 0 : index
    %31 = vector.load %arg3[%c0_25, %c0_26] : memref<8x2xf32, #tpu.memory_space<vmem>>, vector<8x2xf32>
    tpu.vector_store %arg3[%c0_25, %c0_26], %30 {strides = array<i32>} : memref<8x2xf32, #tpu.memory_space<vmem>>, vector<8x2xf32>,
    return
  }
}

</mosaic_0001>

<llo_original>
// kernel: critic_forward.1
$region0: #{critic_forward.1}
  #allocation0 [shape = 'u32[]', space=smem, size = 0x4, offset = 0x4, fixed_abs, tag = 'smem constant byte address 0x4 - core index']
  #allocation1 [shape = 'u32[144,128]{1,0:T(1,128)}', space=vmem, size = 0x12000, scoped, tag = 'internal scratch']
  %s0 = inlined_call_operand.vmem [shape: f32[8,16], index: 0, kind: input, shape index: {}]
  %s1 = inlined_call_operand.vmem [shape: f32[8,8], index: 1, kind: input, shape index: {}]
  %s2 = inlined_call_operand.vmem [shape: f32[4,72,64], index: 2, kind: input, shape index: {}]
  %s3 = inlined_call_operand.vmem [shape: f32[8,2], index: 3, kind: output, shape index: {}]
  %s4 = sld [smem:[#allocation0]]
  $region22: #{critic_forward.1} parent=0
    _
  %s6 = ssub.s32 1, %s4
  %s7 = scalar_select 0, %s6, %s4
  // Predicated region
  $region2: #{critic_forward.1} parent=0 // pred_check
    _
  $region3: #{critic_forward.1} parent=0 // pred_check_branch
    %9 = sbr.rel (0) target = $region5
  $region4: #{critic_forward.1} parent=0 // pred_region
    _
  $region5: #{critic_forward.1} parent=0 // pred_fallthru
    _
  // Predicated region
  $region6: #{critic_forward.1} parent=0 // pred_check
    _
  $region7: #{critic_forward.1} parent=0 // pred_check_branch
    %11 = sbr.rel (0) target = $region9
  $region8: #{critic_forward.1} parent=0 // pred_region
    _
  $region9: #{critic_forward.1} parent=0 // pred_fallthru
    _
  // Predicated region
  $region10: #{critic_forward.1} parent=0 // pred_check
    _
  $region11: #{critic_forward.1} parent=0 // pred_check_branch
    %13 = sbr.rel (0) target = $region13
  $region12: #{critic_forward.1} parent=0 // pred_region
    _
  $region13: #{critic_forward.1} parent=0 // pred_fallthru
    _
  %v14 = vld [vmem:[%s0] sm:$0xff]
  %v15 = vld [vmem:[%s2] sm:$0xff]
  %v16 = vld [vmem:[%s2 + $0x8] sm:$0xff]
  %v17 = vld [vmem:[%s1] sm:$0xff]
  %s18 = scalar_lea.vmem %s2, 72
  %v19 = vld [vmem:[%s18] sm:$0xff]
  %vm20 = vcmask 64512
  %v22 = vsel %vm20, %v17, 0
  %24 = vmatprep.subr.mxu0 0.0
  %25 = vmatpush1.msra.mxu0 %v19
  %26 = vmatprep.subr.mxu0 0.0
  %27 = vmatpush1.msra.mxu0 0.0
  %28 = vmatprep.subr.mxu0 0.0
  %29 = vmatpush1.msra.mxu0 0.0
  %30 = vmatprep.subr.mxu0 0.0
  %31 = vmatpush1.msra.mxu0 0.0
  %32 = vmatprep.subr.mxu0 0.0
  %33 = vmatpush1.msra.mxu0 0.0
  %34 = vmatprep.subr.mxu0 0.0
  %35 = vmatpush1.msra.mxu0 0.0
  %36 = vmatprep.subr.mxu0 0.0
  %37 = vmatpush1.msra.mxu0 0.0
  %38 = vmatprep.subr.mxu0 0.0
  %39 = vmatpush1.msra.mxu0 0.0
  %40 = vmatprep.subr.mxu0 0.0
  %41 = vmatpush1.msra.mxu0 0.0
  %42 = vmatprep.subr.mxu0 0.0
  %43 = vmatpush1.msra.mxu0 0.0
  %44 = vmatprep.subr.mxu0 0.0
  %45 = vmatpush1.msra.mxu0 0.0
  %46 = vmatprep.subr.mxu0 0.0
  %47 = vmatpush1.msra.mxu0 0.0
  %48 = vmatprep.subr.mxu0 0.0
  %49 = vmatpush1.msra.mxu0 0.0
  %50 = vmatprep.subr.mxu0 0.0
  %51 = vmatpush1.msra.mxu0 0.0
  %52 = vmatprep.subr.mxu0 0.0
  %53 = vmatpush1.msra.mxu0 0.0
  %54 = vmatprep.subr.mxu0 0.0
  %55 = vmatpush1.msra.mxu0 0.0
  %56 = vmatprep.subr.mxu0 0.0
  %57 = vmatpush1.msra.mxu0 0.0
  %58 = vmatprep.subr.mxu0 0.0
  %59 = vmatpush1.msra.mxu0 0.0
  %60 = vmatprep.subr.mxu0 0.0
  %61 = vmatpush1.msra.mxu0 0.0
  %62 = vmatprep.subr.mxu0 0.0
  %63 = vmatpush1.msra.mxu0 0.0
  %64 = vmatprep.subr.mxu0 0.0
  %65 = vmatpush1.msra.mxu0 0.0
  %66 = vmatprep.subr.mxu0 0.0
  %67 = vmatpush1.msra.mxu0 0.0
  %68 = vmatprep.subr.mxu0 0.0
  %69 = vmatpush1.msra.mxu0 0.0
  %70 = vmatprep.subr.mxu0 0.0
  %71 = vmatpush1.msra.mxu0 0.0
  %72 = vmatprep.subr.mxu0 0.0
  %73 = vmatpush1.msra.mxu0 0.0
  %74 = vmatprep.subr.mxu0 0.0
  %75 = vmatpush1.msra.mxu0 0.0
  %76 = vmatprep.subr.mxu0 0.0
  %77 = vmatpush1.msra.mxu0 0.0
  %78 = vmatprep.subr.mxu0 0.0
  %79 = vmatpush1.msra.mxu0 0.0
  %80 = vmatprep.subr.mxu0 0.0
  %81 = vmatpush1.msra.mxu0 0.0
  %82 = vmatprep.subr.mxu0 0.0
  %83 = vmatpush1.msra.mxu0 0.0
  %84 = vmatprep.subr.mxu0 0.0
  %85 = vmatpush1.msra.mxu0 0.0
  %86 = vmatprep.subr.mxu0 0.0
  %87 = vmatpush1.msra.mxu0 0.0
  %88 = vmatprep.mubr.f32.mxu0 0.0
  %89 = vmatmul.mubr.f32.gmra.mrb[0].mxu0 %v22
  %v90 = vpop.f32.mrb[0].mxu0
  %v91 = vadd.f32 0.0, %v90
  %v92 = vpop.f32.mrb[0].mxu0
  %93 = vdwg.mxu0
  %vm94 = vcmask 130048
  %v96 = vsel %vm94, %v14, 0
  %98 = vmatprep.subr.mxu0 0.0
  %99 = vmatpush1.msra.mxu0 %v15
  %100 = vmatprep.subr.mxu0 0.0
  %101 = vmatpush1.msra.mxu0 %v16
  %102 = vmatprep.subr.mxu0 0.0
  %103 = vmatpush1.msra.mxu0 0.0
  %104 = vmatprep.subr.mxu0 0.0
  %105 = vmatpush1.msra.mxu0 0.0
  %106 = vmatprep.subr.mxu0 0.0
  %107 = vmatpush1.msra.mxu0 0.0
  %108 = vmatprep.subr.mxu0 0.0
  %109 = vmatpush1.msra.mxu0 0.0
  %110 = vmatprep.subr.mxu0 0.0
  %111 = vmatpush1.msra.mxu0 0.0
  %112 = vmatprep.subr.mxu0 0.0
  %113 = vmatpush1.msra.mxu0 0.0
  %114 = vmatprep.subr.mxu0 0.0
  %115 = vmatpush1.msra.mxu0 0.0
  %116 = vmatprep.subr.mxu0 0.0
  %117 = vmatpush1.msra.mxu0 0.0
  %118 = vmatprep.subr.mxu0 0.0
  %119 = vmatpush1.msra.mxu0 0.0
  %120 = vmatprep.subr.mxu0 0.0
  %121 = vmatpush1.msra.mxu0 0.0
  %122 = vmatprep.subr.mxu0 0.0
  %123 = vmatpush1.msra.mxu0 0.0
  %124 = vmatprep.subr.mxu0 0.0
  %125 = vmatpush1.msra.mxu0 0.0
  %126 = vmatprep.subr.mxu0 0.0
  %127 = vmatpush1.msra.mxu0 0.0
  %128 = vmatprep.subr.mxu0 0.0
  %129 = vmatpush1.msra.mxu0 0.0
  %130 = vmatprep.subr.mxu0 0.0
  %131 = vmatpush1.msra.mxu0 0.0
  %132 = vmatprep.subr.mxu0 0.0
  %133 = vmatpush1.msra.mxu0 0.0
  %134 = vmatprep.subr.mxu0 0.0
  %135 = vmatpush1.msra.mxu0 0.0
  %136 = vmatprep.subr.mxu0 0.0
  %137 = vmatpush1.msra.mxu0 0.0
  %138 = vmatprep.subr.mxu0 0.0
  %139 = vmatpush1.msra.mxu0 0.0
  %140 = vmatprep.subr.mxu0 0.0
  %141 = vmatpush1.msra.mxu0 0.0
  %142 = vmatprep.subr.mxu0 0.0
  %143 = vmatpush1.msra.mxu0 0.0
  %144 = vmatprep.subr.mxu0 0.0
  %145 = vmatpush1.msra.mxu0 0.0
  %146 = vmatprep.subr.mxu0 0.0
  %147 = vmatpush1.msra.mxu0 0.0
  %148 = vmatprep.subr.mxu0 0.0
  %149 = vmatpush1.msra.mxu0 0.0
  %150 = vmatprep.subr.mxu0 0.0
  %151 = vmatpush1.msra.mxu0 0.0
  %152 = vmatprep.subr.mxu0 0.0
  %153 = vmatpush1.msra.mxu0 0.0
  %154 = vmatprep.subr.mxu0 0.0
  %155 = vmatpush1.msra.mxu0 0.0
  %156 = vmatprep.subr.mxu0 0.0
  %157 = vmatpush1.msra.mxu0 0.0
  %158 = vmatprep.subr.mxu0 0.0
  %159 = vmatpush1.msra.mxu0 0.0
  %160 = vmatprep.subr.mxu0 0.0
  %161 = vmatpush1.msra.mxu0 0.0
  %162 = vmatprep.mubr.f32.mxu0 0.0
  %163 = vmatmul.mubr.f32.gmra.mrb[0].mxu0 %v96
  %v164 = vpop.f32.mrb[0].mxu0
  %v165 = vadd.f32 %v91, %v164
  %v166 = vpop.f32.mrb[0].mxu0
  %167 = vdwg.mxu0
  %v168 = vld [vmem:[%s2 + $0x40] sm:$0x1]
  %v169 = vlaneseq
  %v170 = vshrl.u32 %v169, 7
  %v171 = vsub.s32 0, %v170
  %v172 = vrot.slane %v168, %v171
  %v173 = vadd.f32 %v165, %v172
  %v174 = vmax.f32 %v173, 0.0
  %s175 = scalar_lea.vmem %s2, 144
  %v176 = vld [vmem:[%s175] sm:$0xff]
  %v177 = vld [vmem:[%s175 + $0x8] sm:$0xff]
  %v178 = vld [vmem:[%s175 + $0x10] sm:$0xff]
  %v179 = vld [vmem:[%s175 + $0x18] sm:$0xff]
  %v180 = vld [vmem:[%s175 + $0x20] sm:$0xff]
  %v181 = vld [vmem:[%s175 + $0x28] sm:$0xff]
  %v182 = vld [vmem:[%s175 + $0x30] sm:$0xff]
  %v183 = vld [vmem:[%s175 + $0x38] sm:$0xff]
  %v184 = vld [vmem:[%s175 + $0x40] sm:$0x1]
  %v185 = vlaneseq
  %v186 = vshrl.u32 %v185, 7
  %v187 = vsub.s32 0, %v186
  %v188 = vrot.slane %v184, %v187
  %vm189 = vcmask 523264
  %v191 = vsel %vm189, %v174, 0
  %193 = vmatprep.subr.mxu0 0.0
  %194 = vmatpush1.msra.mxu0 %v176
  %195 = vmatprep.subr.mxu0 0.0
  %196 = vmatpush1.msra.mxu0 %v177
  %197 = vmatprep.subr.mxu0 0.0
  %198 = vmatpush1.msra.mxu0 %v178
  %199 = vmatprep.subr.mxu0 0.0
  %200 = vmatpush1.msra.mxu0 %v179
  %201 = vmatprep.subr.mxu0 0.0
  %202 = vmatpush1.msra.mxu0 %v180
  %203 = vmatprep.subr.mxu0 0.0
  %204 = vmatpush1.msra.mxu0 %v181
  %205 = vmatprep.subr.mxu0 0.0
  %206 = vmatpush1.msra.mxu0 %v182
  %207 = vmatprep.subr.mxu0 0.0
  %208 = vmatpush1.msra.mxu0 %v183
  %209 = vmatprep.subr.mxu0 0.0
  %210 = vmatpush1.msra.mxu0 0.0
  %211 = vmatprep.subr.mxu0 0.0
  %212 = vmatpush1.msra.mxu0 0.0
  %213 = vmatprep.subr.mxu0 0.0
  %214 = vmatpush1.msra.mxu0 0.0
  %215 = vmatprep.subr.mxu0 0.0
  %216 = vmatpush1.msra.mxu0 0.0
  %217 = vmatprep.subr.mxu0 0.0
  %218 = vmatpush1.msra.mxu0 0.0
  %219 = vmatprep.subr.mxu0 0.0
  %220 = vmatpush1.msra.mxu0 0.0
  %221 = vmatprep.subr.mxu0 0.0
  %222 = vmatpush1.msra.mxu0 0.0
  %223 = vmatprep.subr.mxu0 0.0
  %224 = vmatpush1.msra.mxu0 0.0
  %225 = vmatprep.subr.mxu0 0.0
  %226 = vmatpush1.msra.mxu0 0.0
  %227 = vmatprep.subr.mxu0 0.0
  %228 = vmatpush1.msra.mxu0 0.0
  %229 = vmatprep.subr.mxu0 0.0
  %230 = vmatpush1.msra.mxu0 0.0
  %231 = vmatprep.subr.mxu0 0.0
  %232 = vmatpush1.msra.mxu0 0.0
  %233 = vmatprep.subr.mxu0 0.0
  %234 = vmatpush1.msra.mxu0 0.0
  %235 = vmatprep.subr.mxu0 0.0
  %236 = vmatpush1.msra.mxu0 0.0
  %237 = vmatprep.subr.mxu0 0.0
  %238 = vmatpush1.msra.mxu0 0.0
  %239 = vmatprep.subr.mxu0 0.0
  %240 = vmatpush1.msra.mxu0 0.0
  %241 = vmatprep.subr.mxu0 0.0
  %242 = vmatpush1.msra.mxu0 0.0
  %243 = vmatprep.subr.mxu0 0.0
  %244 = vmatpush1.msra.mxu0 0.0
  %245 = vmatprep.subr.mxu0 0.0
  %246 = vmatpush1.msra.mxu0 0.0
  %247 = vmatprep.subr.mxu0 0.0
  %248 = vmatpush1.msra.mxu0 0.0
  %249 = vmatprep.subr.mxu0 0.0
  %250 = vmatpush1.msra.mxu0 0.0
  %251 = vmatprep.subr.mxu0 0.0
  %252 = vmatpush1.msra.mxu0 0.0
  %253 = vmatprep.subr.mxu0 0.0
  %254 = vmatpush1.msra.mxu0 0.0
  %255 = vmatprep.subr.mxu0 0.0
  %256 = vmatpush1.msra.mxu0 0.0
  %257 = vmatprep.mubr.f32.mxu0 0.0
  %258 = vmatmul.mubr.f32.gmra.mrb[0].mxu0 %v191
  %v259 = vpop.f32.mrb[0].mxu0
  %v260 = vadd.f32 %v188, %v259
  %v261 = vpop.f32.mrb[0].mxu0
  %262 = vdwg.mxu0
  %v263 = vmax.f32 %v260, 0.0
  %s264 = scalar_lea.vmem %s2, 216
  %v265 = vld [vmem:[%s264] sm:$0xff]
  %v266 = vld [vmem:[%s264 + $0x8] sm:$0xff]
  %v267 = vld [vmem:[%s264 + $0x10] sm:$0xff]
  %v268 = vld [vmem:[%s264 + $0x18] sm:$0xff]
  %v269 = vld [vmem:[%s264 + $0x20] sm:$0xff]
  %v270 = vld [vmem:[%s264 + $0x28] sm:$0xff]
  %v271 = vld [vmem:[%s264 + $0x30] sm:$0xff]
  %v272 = vld [vmem:[%s264 + $0x38] sm:$0xff]
  %v273 = vld [vmem:[%s264 + $0x40] sm:$0x1]
  %v274 = vlaneseq
  %v275 = vshrl.u32 %v274, 7
  %v276 = vsub.s32 0, %v275
  %v277 = vrot.slane %v273, %v276
  %v279 = vsel %vm189, %v263, 0
  %281 = vmatprep.subr.mxu0 0.0
  %282 = vmatpush1.msra.mxu0 %v265
  %283 = vmatprep.subr.mxu0 0.0
  %284 = vmatpush1.msra.mxu0 %v266
  %285 = vmatprep.subr.mxu0 0.0
  %286 = vmatpush1.msra.mxu0 %v267
  %287 = vmatprep.subr.mxu0 0.0
  %288 = vmatpush1.msra.mxu0 %v268
  %289 = vmatprep.subr.mxu0 0.0
  %290 = vmatpush1.msra.mxu0 %v269
  %291 = vmatprep.subr.mxu0 0.0
  %292 = vmatpush1.msra.mxu0 %v270
  %293 = vmatprep.subr.mxu0 0.0
  %294 = vmatpush1.msra.mxu0 %v271
  %295 = vmatprep.subr.mxu0 0.0
  %296 = vmatpush1.msra.mxu0 %v272
  %297 = vmatprep.subr.mxu0 0.0
  %298 = vmatpush1.msra.mxu0 0.0
  %299 = vmatprep.subr.mxu0 0.0
  %300 = vmatpush1.msra.mxu0 0.0
  %301 = vmatprep.subr.mxu0 0.0
  %302 = vmatpush1.msra.mxu0 0.0
  %303 = vmatprep.subr.mxu0 0.0
  %304 = vmatpush1.msra.mxu0 0.0
  %305 = vmatprep.subr.mxu0 0.0
  %306 = vmatpush1.msra.mxu0 0.0
  %307 = vmatprep.subr.mxu0 0.0
  %308 = vmatpush1.msra.mxu0 0.0
  %309 = vmatprep.subr.mxu0 0.0
  %310 = vmatpush1.msra.mxu0 0.0
  %311 = vmatprep.subr.mxu0 0.0
  %312 = vmatpush1.msra.mxu0 0.0
  %313 = vmatprep.subr.mxu0 0.0
  %314 = vmatpush1.msra.mxu0 0.0
  %315 = vmatprep.subr.mxu0 0.0
  %316 = vmatpush1.msra.mxu0 0.0
  %317 = vmatprep.subr.mxu0 0.0
  %318 = vmatpush1.msra.mxu0 0.0
  %319 = vmatprep.subr.mxu0 0.0
  %320 = vmatpush1.msra.mxu0 0.0
  %321 = vmatprep.subr.mxu0 0.0
  %322 = vmatpush1.msra.mxu0 0.0
  %323 = vmatprep.subr.mxu0 0.0
  %324 = vmatpush1.msra.mxu0 0.0
  %325 = vmatprep.subr.mxu0 0.0
  %326 = vmatpush1.msra.mxu0 0.0
  %327 = vmatprep.subr.mxu0 0.0
  %328 = vmatpush1.msra.mxu0 0.0
  %329 = vmatprep.subr.mxu0 0.0
  %330 = vmatpush1.msra.mxu0 0.0
  %331 = vmatprep.subr.mxu0 0.0
  %332 = vmatpush1.msra.mxu0 0.0
  %333 = vmatprep.subr.mxu0 0.0
  %334 = vmatpush1.msra.mxu0 0.0
  %335 = vmatprep.subr.mxu0 0.0
  %336 = vmatpush1.msra.mxu0 0.0
  %337 = vmatprep.subr.mxu0 0.0
  %338 = vmatpush1.msra.mxu0 0.0
  %339 = vmatprep.subr.mxu0 0.0
  %340 = vmatpush1.msra.mxu0 0.0
  %341 = vmatprep.subr.mxu0 0.0
  %342 = vmatpush1.msra.mxu0 0.0
  %343 = vmatprep.subr.mxu0 0.0
  %344 = vmatpush1.msra.mxu0 0.0
  %345 = vmatprep.mubr.f32.mxu0 0.0
  %346 = vmatmul.mubr.f32.gmra.mrb[0].mxu0 %v279
  %v347 = vpop.f32.mrb[0].mxu0
  %v348 = vadd.f32 %v277, %v347
  %v349 = vpop.f32.mrb[0].mxu0
  %350 = vdwg.mxu0
  %vm351 = vcmask 15360
  %352 = vst.msk [vmem:[%s3] sm:$0xff] %vm351, %v348
  // Predicated region
  $region14: #{critic_forward.1} parent=0 // pred_check
    _
  $region15: #{critic_forward.1} parent=0 // pred_check_branch
    %354 = sbr.rel (0) target = $region17
  $region16: #{critic_forward.1} parent=0 // pred_region
    _
  $region17: #{critic_forward.1} parent=0 // pred_fallthru
    _
  // Predicated region
  $region18: #{critic_forward.1} parent=0 // pred_check
    _
  $region19: #{critic_forward.1} parent=0 // pred_check_branch
    %356 = sbr.rel (0) target = $region21
  $region20: #{critic_forward.1} parent=0 // pred_region
    _
  $region21: #{critic_forward.1} parent=0 // pred_fallthru
    _

</llo_original>
